<compile_context>
chip_gen: v6e
topology: v6e:2x2x1
jax: 0.10.0
libtpu: 0.0.40
codegen_flags: <defaults>
</compile_context>

<pallas_src>
import functools

import jax
import jax.numpy as jnp
from jax.experimental import pallas as pl
from jax.experimental.pallas import tpu as pltpu


def _ann_kernel(x_ref, w0_ref, b0_ref, w_ref, b_ref, o_ref, *, n_layers):
    """Fused MLP: fc0 followed by (n_layers - 1) relu+fc layers.

    x_ref:  (tm, K)   activation tile
    w0_ref: (K, N)    fc0 weight (transposed), whole array
    b0_ref: (1, N)    fc0 bias
    w_ref:  (N, N)    fc weight (transposed), whole array
    b_ref:  (1, N)    fc bias
    o_ref:  (tm, N)   output tile
    """
    # fc0: single full-K matmul, bias folded into the same expression.
    y = jnp.dot(x_ref[...], w0_ref[...],
                preferred_element_type=jnp.float32) + b0_ref[...]

    if n_layers > 1:
        # Load the shared fc weight/bias once, outside the layer loop.
        w = w_ref[...]
        b = b_ref[...]
        # Static unrolled layer loop (n_layers is a Python int).
        for _ in range(n_layers - 1):
            # dropout == identity (eval mode); relu fused on the matmul input.
            y = jnp.dot(jnp.maximum(y, 0.0), w,
                        preferred_element_type=jnp.float32) + b

    o_ref[...] = y.astype(o_ref.dtype)


def ann_forward(x, params, n_ANNlayers=1):
    """Mirrors ANN.forward (dropout = identity / eval mode) in one pallas_call.

    x: (M, input_size) float32
    params: (w0_t, b0, w_t, b) with weights pre-transposed to (in, out).
    """
    w0_t, b0, w_t, b = params
    M, K = x.shape
    Kw, N = w0_t.shape
    assert K == Kw
    assert w_t.shape == (N, N)
    assert b0.shape == (N,) and b.shape == (N,)

    # Row tile: one block for small batches, 128-row blocks for large batches
    # (multiple blocks on the M axis let the "parallel" axis shard across
    # TensorCores on multi-TC chips).
    if M <= 128:
        tm = M                      # full-dim block: always layout-legal
    else:
        assert M % 128 == 0, "batch must be a multiple of 128 when > 128"
        tm = 128

    b0_2 = b0.reshape(1, N)
    b_2 = b.reshape(1, N)

    kernel = functools.partial(_ann_kernel, n_layers=n_ANNlayers)

    return pl.pallas_call(
        kernel,
        out_shape=jax.ShapeDtypeStruct((M, N), x.dtype),
        grid_spec=pl.GridSpec(
            grid=(M // tm,),
            in_specs=[
                pl.BlockSpec((tm, K), lambda i: (i, 0)),   # x row-tile
                pl.BlockSpec((K, N), lambda i: (0, 0)),    # w0_t (whole array)
                pl.BlockSpec((1, N), lambda i: (0, 0)),    # b0
                pl.BlockSpec((N, N), lambda i: (0, 0)),    # w_t (whole array)
                pl.BlockSpec((1, N), lambda i: (0, 0)),    # b
            ],
            out_specs=pl.BlockSpec((tm, N), lambda i: (i, 0)),
        ),
        compiler_params=pltpu.CompilerParams(
            dimension_semantics=("parallel",),
        ),
    )(x, w0_t, b0_2, w_t, b_2)


def make_params(key, input_size, reduced_size, dtype=jnp.float32):
    """Deterministic synthetic parameters (PyTorch-Linear-like uniform init)."""
    k0, k1, k2, k3 = jax.random.split(key, 4)
    lim0 = 1.0 / jnp.sqrt(input_size)
    lim1 = 1.0 / jnp.sqrt(reduced_size)
    # weights stored already transposed: (in, out)
    w0_t = jax.random.uniform(k0, (input_size, reduced_size), dtype, -lim0, lim0)
    b0 = jax.random.uniform(k1, (reduced_size,), dtype, -lim0, lim0)
    w_t = jax.random.uniform(k2, (reduced_size, reduced_size), dtype, -lim1, lim1)
    b = jax.random.uniform(k3, (reduced_size,), dtype, -lim1, lim1)
    return w0_t, b0, w_t, b


def ann_forward_ref(x, params, n_ANNlayers=1):
    """Pure-JAX reference for correctness checking."""
    w0_t, b0, w_t, b = params
    y = x @ w0_t + b0
    for _ in range(n_ANNlayers - 1):
        y = jnp.maximum(y, 0.0) @ w_t + b
    return y


if __name__ == "__main__":
    # Small shapes consistent with the module (input_size -> reduced_size MLP).
    batch = 8
    input_size = 256
    reduced_size = 128

    key = jax.random.PRNGKey(0)
    kx, kp = jax.random.split(key)
    x = jax.random.normal(kx, (batch, input_size), dtype=jnp.float32)
    params = make_params(kp, input_size, reduced_size)

    # Default module config: n_ANNlayers=1 (forward == fc0(x)).
    y1 = ann_forward(x, params, n_ANNlayers=1)
    y1 = jax.block_until_ready(y1)

    # Also exercise the relu + fc path (n_ANNlayers=2 and 3).
    y2 = ann_forward(x, params, n_ANNlayers=2)
    y2 = jax.block_until_ready(y2)
    y3 = ann_forward(x, params, n_ANNlayers=3)
    y3 = jax.block_until_ready(y3)

    # Correctness check against pure-JAX reference.
    r1 = ann_forward_ref(x, params, n_ANNlayers=1)
    r2 = ann_forward_ref(x, params, n_ANNlayers=2)
    r3 = ann_forward_ref(x, params, n_ANNlayers=3)
    assert jnp.allclose(y1, r1, atol=1e-4, rtol=1e-4)
    assert jnp.allclose(y2, r2, atol=1e-4, rtol=1e-4)
    assert jnp.allclose(y3, r3, atol=1e-4, rtol=1e-4)
    assert y1.shape == (batch, reduced_size)
    assert y2.shape == (batch, reduced_size)
    assert y3.shape == (batch, reduced_size)

    print("KERNEL_OK")
</pallas_src>

<mosaic_0001>
module attributes {stable_mosaic.version = 11 : i64} {
  func.func @_ann_kernel(%arg0: i32, %arg1: memref<8x256xf32, #tpu.memory_space<vmem>>, %arg2: memref<256x128xf32, #tpu.memory_space<vmem>>, %arg3: memref<1x128xf32, #tpu.memory_space<vmem>>, %arg4: memref<128x128xf32, #tpu.memory_space<vmem>>, %arg5: memref<1x128xf32, #tpu.memory_space<vmem>>, %arg6: memref<8x128xf32, #tpu.memory_space<vmem>>) attributes {dimension_semantics = [#tpu.dimension_semantics<parallel>], iteration_bounds = array<i64: 1>, scalar_prefetch = 0 : i64, scratch_operands = 0 : i64, tpu.core_type = #tpu.core_type<tc>, window_params = [{transform_indices = @transform_0, window_bounds = array<i64: 8, 256>}, {pipeline_mode = #tpu.pipeline_mode<synchronous>, transform_indices = @transform_1, window_bounds = array<i64: 256, 128>}, {pipeline_mode = #tpu.pipeline_mode<synchronous>, transform_indices = @transform_2, window_bounds = array<i64: 1, 128>}, {pipeline_mode = #tpu.pipeline_mode<synchronous>, transform_indices = @transform_3, window_bounds = array<i64: 128, 128>}, {pipeline_mode = #tpu.pipeline_mode<synchronous>, transform_indices = @transform_4, window_bounds = array<i64: 1, 128>}, {transform_indices = @transform_5, window_bounds = array<i64: 8, 128>}]} {
    %c0 = arith.constant 0 : index
    %c0_0 = arith.constant 0 : index
    %0 = vector.load %arg1[%c0, %c0_0] : memref<8x256xf32, #tpu.memory_space<vmem>>, vector<8x256xf32>
    %c0_1 = arith.constant 0 : index
    %c0_2 = arith.constant 0 : index
    %1 = vector.load %arg2[%c0_1, %c0_2] : memref<256x128xf32, #tpu.memory_space<vmem>>, vector<256x128xf32>
    %cst = arith.constant dense<0.000000e+00> : vector<8x128xf32>
    %2 = tpu.matmul %0, %1, %cst {dimension_numbers = #tpu.dot_dimension_numbers<[1], [0], [0], [1], [0, 0, 1, 1], [], []>} : vector<8x256xf32>, vector<256x128xf32>, vector<8x128xf32> -> vector<8x128xf32>
    %c0_3 = arith.constant 0 : index
    %c0_4 = arith.constant 0 : index
    %3 = vector.load %arg3[%c0_3, %c0_4] : memref<1x128xf32, #tpu.memory_space<vmem>>, vector<1x128xf32>
    %4 = vector.broadcast %3 : vector<1x128xf32> to vector<8x128xf32>
    %5 = arith.addf %2, %4 : vector<8x128xf32>
    %c0_5 = arith.constant 0 : index
    %c0_6 = arith.constant 0 : index
    %6 = vector.load %arg6[%c0_5, %c0_6] : memref<8x128xf32, #tpu.memory_space<vmem>>, vector<8x128xf32>
    tpu.vector_store %arg6[%c0_5, %c0_6], %5 {strides = array<i32>} : memref<8x128xf32, #tpu.memory_space<vmem>>, vector<8x128xf32>,
    return
  }
  func.func @transform_0(%arg0: i32) -> (i32, i32) {
    %c0_i32 = arith.constant 0 : i32
    %c0_i32_0 = arith.constant 0 : i32
    return %arg0, %c0_i32 : i32, i32
  }
  func.func @transform_1(%arg0: i32) -> (i32, i32) {
    %c0_i32 = arith.constant 0 : i32
    %c0_i32_0 = arith.constant 0 : i32
    %c0_i32_1 = arith.constant 0 : i32
    return %c0_i32, %c0_i32_0 : i32, i32
  }
  func.func @transform_2(%arg0: i32) -> (i32, i32) {
    %c0_i32 = arith.constant 0 : i32
    %c0_i32_0 = arith.constant 0 : i32
    %c0_i32_1 = arith.constant 0 : i32
    return %c0_i32, %c0_i32_0 : i32, i32
  }
  func.func @transform_3(%arg0: i32) -> (i32, i32) {
    %c0_i32 = arith.constant 0 : i32
    %c0_i32_0 = arith.constant 0 : i32
    %c0_i32_1 = arith.constant 0 : i32
    return %c0_i32, %c0_i32_0 : i32, i32
  }
  func.func @transform_4(%arg0: i32) -> (i32, i32) {
    %c0_i32 = arith.constant 0 : i32
    %c0_i32_0 = arith.constant 0 : i32
    %c0_i32_1 = arith.constant 0 : i32
    return %c0_i32, %c0_i32_0 : i32, i32
  }
  func.func @transform_5(%arg0: i32) -> (i32, i32) {
    %c0_i32 = arith.constant 0 : i32
    %c0_i32_0 = arith.constant 0 : i32
    return %arg0, %c0_i32 : i32, i32
  }
}

</mosaic_0001>

<llo_original>
// kernel: tpu_custom_call.1
$region0: #{tpu_custom_call.1}
  #allocation0 [shape = 'u32[]', space=smem, size = 0x4, offset = 0x4, fixed_abs, tag = 'smem constant byte address 0x4 - core index']
  #allocation1 [shape = 'u32[144,128]{1,0:T(1,128)}', space=vmem, size = 0x12000, scoped, tag = 'internal scratch']
  %s0 = inlined_call_operand.hbm [shape: f32[8,256], index: 0, kind: input, shape index: {}]
  %s1 = inlined_call_operand.hbm [shape: f32[256,128], index: 1, kind: input, shape index: {}]
  %s2 = inlined_call_operand.vmem [shape: f32[1,128], index: 2, kind: input, shape index: {}]
  %s3 = inlined_call_operand.hbm [shape: f32[128,128], index: 3, kind: input, shape index: {}]
  %s4 = inlined_call_operand.vmem [shape: f32[1,128], index: 4, kind: input, shape index: {}]
  %s5 = inlined_call_operand.hbm [shape: f32[8,128], index: 5, kind: output, shape index: {}]
  %s6 = sld [smem:[#allocation0]]
  $region42: #{tpu_custom_call.1} parent=0
    _
  %s8 = ssub.s32 1, %s6
  %s9 = scalar_select 0, %s8, %s6
  $region1: #{tpu_custom_call.1} parent=0
    #allocation2 [shape = 'u8[8192]{0}', space=vmem, size = 0x2000, scoped, tag = 'input window, operand 0, single buffered']
    #allocation3 [shape = 's32[1]{0}', space=sflag, size = 0x4, scoped, tag = 'scoped memory for tpu_custom_call.1']
    #allocation4 [shape = 's32[1]{0}', space=sflag, size = 0x4, scoped, tag = 'scoped memory for tpu_custom_call.1']
    #allocation5 [shape = 'u8[131072]{0}', space=vmem, size = 0x20000, scoped, tag = 'input window, operand 1, single buffered']
    #allocation6 [shape = 's32[1]{0}', space=sflag, size = 0x4, scoped, tag = 'scoped memory for tpu_custom_call.1']
    #allocation7 [shape = 'u8[65536]{0}', space=vmem, size = 0x10000, scoped, tag = 'input window, operand 3, single buffered']
    #allocation8 [shape = 'u8[4096]{0}', space=vmem, size = 0x1000, scoped, tag = 'output window, operand 0, single buffered']
    %10 = vsyncpa [#allocation3], 0
    %11 = vsyncpa [#allocation6], 0
    %12 = vsyncpa [#allocation4], 0
    // Predicated region
    $region2: #{tpu_custom_call.1} parent=1 // pred_check
      _
    $region3: #{tpu_custom_call.1} parent=1 // pred_check_branch
      %14 = sbr.rel (0) target = $region5
    $region4: #{tpu_custom_call.1} parent=1 // pred_region
      %s16 = ssub.s32 256, 256
      %17 = vsyncadd [#allocation3], %s16
      %s19 = sshll.u32 [#allocation2], 4
      %s20 = int_to_ptr.vmem [resolvable:$true] %s19
      %22 = dma.hbm_to_vmem [thread:$0]  %s0, 256, %s20, [#allocation3]
    $region5: #{tpu_custom_call.1} parent=1 // pred_fallthru
      _
    // Predicated region
    $region6: #{tpu_custom_call.1} parent=1 // pred_check
      _
    $region7: #{tpu_custom_call.1} parent=1 // pred_check_branch
      %24 = sbr.rel (0) target = $region9
    $region8: #{tpu_custom_call.1} parent=1 // pred_region
      %s26 = ssub.s32 4096, 4096
      %27 = vsyncadd [#allocation6], %s26
      %s28 = sshll.u32 [#allocation5], 4
      %s29 = int_to_ptr.vmem [resolvable:$true] %s28
      %34 = dma.hbm_to_vmem [thread:$0]  %s1, 4096, %s29, [#allocation6], 128, 128, 8
    $region9: #{tpu_custom_call.1} parent=1 // pred_fallthru
      _
    // Predicated region
    $region10: #{tpu_custom_call.1} parent=1 // pred_check
      _
    $region11: #{tpu_custom_call.1} parent=1 // pred_check_branch
      %36 = sbr.rel (0) target = $region13
    $region12: #{tpu_custom_call.1} parent=1 // pred_region
      _
    $region13: #{tpu_custom_call.1} parent=1 // pred_fallthru
      _
    // Predicated region
    $region14: #{tpu_custom_call.1} parent=1 // pred_check
      _
    $region15: #{tpu_custom_call.1} parent=1 // pred_check_branch
      %38 = sbr.rel (0) target = $region17
    $region16: #{tpu_custom_call.1} parent=1 // pred_region
      %s40 = ssub.s32 2048, 2048
      %41 = vsyncadd [#allocation6], %s40
      %s42 = sshll.u32 [#allocation7], 4
      %s43 = int_to_ptr.vmem [resolvable:$true] %s42
      %48 = dma.hbm_to_vmem [thread:$0]  %s3, 2048, %s43, [#allocation6], 128, 128, 8
    $region17: #{tpu_custom_call.1} parent=1 // pred_fallthru
      _
    // Predicated region
    $region18: #{tpu_custom_call.1} parent=1 // pred_check
      _
    $region19: #{tpu_custom_call.1} parent=1 // pred_check_branch
      %50 = sbr.rel (0) target = $region21
    $region20: #{tpu_custom_call.1} parent=1 // pred_region
      _
    $region21: #{tpu_custom_call.1} parent=1 // pred_fallthru
      _
    // Predicated region
    $region22: #{tpu_custom_call.1} parent=1 // pred_check
      _
    $region23: #{tpu_custom_call.1} parent=1 // pred_check_branch
      %52 = sbr.rel (0) target = $region25
    $region24: #{tpu_custom_call.1} parent=1 // pred_region
      %53 = dma.done [#allocation3], 256
    $region25: #{tpu_custom_call.1} parent=1 // pred_fallthru
      _
    // Predicated region
    $region26: #{tpu_custom_call.1} parent=1 // pred_check
      _
    $region27: #{tpu_custom_call.1} parent=1 // pred_check_branch
      %55 = sbr.rel (0) target = $region29
    $region28: #{tpu_custom_call.1} parent=1 // pred_region
      %56 = dma.done [#allocation6], 4096
    $region29: #{tpu_custom_call.1} parent=1 // pred_fallthru
      _
    // Predicated region
    $region30: #{tpu_custom_call.1} parent=1 // pred_check
      _
    $region31: #{tpu_custom_call.1} parent=1 // pred_check_branch
      %58 = sbr.rel (0) target = $region33
    $region32: #{tpu_custom_call.1} parent=1 // pred_region
      %59 = dma.done [#allocation6], 2048
    $region33: #{tpu_custom_call.1} parent=1 // pred_fallthru
      _
    %v60 = vld [vmem:[#allocation2] sm:$0xff]
    %v61 = vld [vmem:[#allocation2 + $0x8] sm:$0xff]
    %v62 = vld [vmem:[#allocation5] sm:$0xff]
    %v63 = vld [vmem:[#allocation5 + $0x8] sm:$0xff]
    %v64 = vld [vmem:[#allocation5 + $0x10] sm:$0xff]
    %v65 = vld [vmem:[#allocation5 + $0x18] sm:$0xff]
    %v66 = vld [vmem:[#allocation5 + $0x20] sm:$0xff]
    %v67 = vld [vmem:[#allocation5 + $0x28] sm:$0xff]
    %v68 = vld [vmem:[#allocation5 + $0x30] sm:$0xff]
    %v69 = vld [vmem:[#allocation5 + $0x38] sm:$0xff]
    %v70 = vld [vmem:[#allocation5 + $0x40] sm:$0xff]
    %v71 = vld [vmem:[#allocation5 + $0x48] sm:$0xff]
    %v72 = vld [vmem:[#allocation5 + $0x50] sm:$0xff]
    %v73 = vld [vmem:[#allocation5 + $0x58] sm:$0xff]
    %v74 = vld [vmem:[#allocation5 + $0x60] sm:$0xff]
    %v75 = vld [vmem:[#allocation5 + $0x68] sm:$0xff]
    %v76 = vld [vmem:[#allocation5 + $0x70] sm:$0xff]
    %v77 = vld [vmem:[#allocation5 + $0x78] sm:$0xff]
    %v78 = vld [vmem:[#allocation5 + $0x80] sm:$0xff]
    %v79 = vld [vmem:[#allocation5 + $0x88] sm:$0xff]
    %v80 = vld [vmem:[#allocation5 + $0x90] sm:$0xff]
    %v81 = vld [vmem:[#allocation5 + $0x98] sm:$0xff]
    %v82 = vld [vmem:[#allocation5 + $0xa0] sm:$0xff]
    %v83 = vld [vmem:[#allocation5 + $0xa8] sm:$0xff]
    %v84 = vld [vmem:[#allocation5 + $0xb0] sm:$0xff]
    %v85 = vld [vmem:[#allocation5 + $0xb8] sm:$0xff]
    %v86 = vld [vmem:[#allocation5 + $0xc0] sm:$0xff]
    %v87 = vld [vmem:[#allocation5 + $0xc8] sm:$0xff]
    %v88 = vld [vmem:[#allocation5 + $0xd0] sm:$0xff]
    %v89 = vld [vmem:[#allocation5 + $0xd8] sm:$0xff]
    %v90 = vld [vmem:[#allocation5 + $0xe0] sm:$0xff]
    %v91 = vld [vmem:[#allocation5 + $0xe8] sm:$0xff]
    %v92 = vld [vmem:[#allocation5 + $0xf0] sm:$0xff]
    %v93 = vld [vmem:[#allocation5 + $0xf8] sm:$0xff]
    %v94 = vld [vmem:[%s2] sm:$0x1]
    %v96 = vlaneseq
    %v97 = vshrl.u32 %v96, 7
    %v98 = vsub.s32 0, %v97
    %v99 = vrot.slane %v94, %v98
    %101 = vmatprep.subr.mxu0 0.0
    %102 = vmatpush1.msra.mxu0 %v77
    %103 = vmatprep.subr.mxu0 0.0
    %104 = vmatpush1.msra.mxu0 %v76
    %105 = vmatprep.subr.mxu0 0.0
    %106 = vmatpush1.msra.mxu0 %v75
    %107 = vmatprep.subr.mxu0 0.0
    %108 = vmatpush1.msra.mxu0 %v74
    %109 = vmatprep.subr.mxu0 0.0
    %110 = vmatpush1.msra.mxu0 %v73
    %111 = vmatprep.subr.mxu0 0.0
    %112 = vmatpush1.msra.mxu0 %v72
    %113 = vmatprep.subr.mxu0 0.0
    %114 = vmatpush1.msra.mxu0 %v71
    %115 = vmatprep.subr.mxu0 0.0
    %116 = vmatpush1.msra.mxu0 %v70
    %117 = vmatprep.subr.mxu0 0.0
    %118 = vmatpush1.msra.mxu0 %v69
    %119 = vmatprep.subr.mxu0 0.0
    %120 = vmatpush1.msra.mxu0 %v68
    %121 = vmatprep.subr.mxu0 0.0
    %122 = vmatpush1.msra.mxu0 %v67
    %123 = vmatprep.subr.mxu0 0.0
    %124 = vmatpush1.msra.mxu0 %v66
    %125 = vmatprep.subr.mxu0 0.0
    %126 = vmatpush1.msra.mxu0 %v65
    %127 = vmatprep.subr.mxu0 0.0
    %128 = vmatpush1.msra.mxu0 %v64
    %129 = vmatprep.subr.mxu0 0.0
    %130 = vmatpush1.msra.mxu0 %v63
    %131 = vmatprep.subr.mxu0 0.0
    %132 = vmatpush1.msra.mxu0 %v62
    %133 = vmatprep.subr.mxu0 0.0
    %134 = vmatpush2.msra.mxu0 %v93
    %135 = vmatprep.subr.mxu0 0.0
    %136 = vmatpush2.msra.mxu0 %v92
    %137 = vmatprep.subr.mxu0 0.0
    %138 = vmatpush2.msra.mxu0 %v91
    %139 = vmatprep.subr.mxu0 0.0
    %140 = vmatpush2.msra.mxu0 %v90
    %141 = vmatprep.subr.mxu0 0.0
    %142 = vmatpush2.msra.mxu0 %v89
    %143 = vmatprep.subr.mxu0 0.0
    %144 = vmatpush2.msra.mxu0 %v88
    %145 = vmatprep.subr.mxu0 0.0
    %146 = vmatpush2.msra.mxu0 %v87
    %147 = vmatprep.subr.mxu0 0.0
    %148 = vmatpush2.msra.mxu0 %v86
    %149 = vmatprep.subr.mxu0 0.0
    %150 = vmatpush2.msra.mxu0 %v85
    %151 = vmatprep.subr.mxu0 0.0
    %152 = vmatpush2.msra.mxu0 %v84
    %153 = vmatprep.subr.mxu0 0.0
    %154 = vmatpush2.msra.mxu0 %v83
    %155 = vmatprep.subr.mxu0 0.0
    %156 = vmatpush2.msra.mxu0 %v82
    %157 = vmatprep.subr.mxu0 0.0
    %158 = vmatpush2.msra.mxu0 %v81
    %159 = vmatprep.subr.mxu0 0.0
    %160 = vmatpush2.msra.mxu0 %v80
    %161 = vmatprep.subr.mxu0 0.0
    %162 = vmatpush2.msra.mxu0 %v79
    %163 = vmatprep.subr.mxu0 0.0
    %164 = vmatpush2.msra.mxu0 %v78
    %165 = vmatprep.mubr.f32.mxu0 %v61
    %166 = vmatmul.mubr.f32.gmra.mxu0 %v60
    %v167 = vpop.f32.mrf.mxu0
    %v168 = vadd.f32 %v99, %v167
    %v169 = vpop.f32.mrf.mxu0
    %170 = vdwg.mxu0
    %171 = vst [vmem:[#allocation8] sm:$0xff] %v168
    // Predicated region
    $region34: #{tpu_custom_call.1} parent=1 // pred_check
      _
    $region35: #{tpu_custom_call.1} parent=1 // pred_check_branch
      %173 = sbr.rel (0) target = $region37
    $region36: #{tpu_custom_call.1} parent=1 // pred_region
      %s175 = ssub.s32 128, 128
      %176 = vsyncadd [#allocation4], %s175
      %s178 = sshll.u32 [#allocation8], 4
      %s179 = int_to_ptr.vmem [resolvable:$true] %s178
      %181 = dma.vmem_to_hbm [thread:$0]  %s179, 128, %s5, [#allocation4]
    $region37: #{tpu_custom_call.1} parent=1 // pred_fallthru
      _
    // Predicated region
    $region38: #{tpu_custom_call.1} parent=1 // pred_check
      _
    $region39: #{tpu_custom_call.1} parent=1 // pred_check_branch
      %183 = sbr.rel (0) target = $region41
    $region40: #{tpu_custom_call.1} parent=1 // pred_region
      %184 = dma.done [#allocation4], 128
    $region41: #{tpu_custom_call.1} parent=1 // pred_fallthru
      _
    %185 = vsyncpa [#allocation3], 1
    %186 = vsyncpa [#allocation6], 1
    %187 = vsyncpa [#allocation4], 1

</llo_original>
